<compile_context>
chip_gen: v6e
topology: v6e:2x2x1
jax: 0.10.0
libtpu: 0.0.40
codegen_flags: <defaults>
</compile_context>

<pallas_src>
import functools
import math

import jax
import jax.numpy as jnp
from jax import lax
from jax.experimental import pallas as pl
from jax.experimental.pallas import tpu as pltpu

LN_EPS = 1e-6


def _decoder_kernel(x_ref, w1_ref, b1_ref, w2_ref, b2_ref, w3_ref, b3_ref,
                    gamma_ref, beta_ref, o_ref, *, eps):
    """Fused Text_ChannelDecoder forward for one row-tile.

    x_ref:          (TM, in_features)
    w*_ref:         (fan_in, fan_out) pre-transposed Linear weights
    b*_ref:         (1, fan_out)
    gamma/beta_ref: (1, size1) LayerNorm affine params
    o_ref:          (TM, size1)
    """
    x = x_ref[...]

    x1 = jnp.dot(x, w1_ref[...], preferred_element_type=jnp.float32) + b1_ref[...]
    x2 = jnp.maximum(x1, 0.0)                       # ReLU
    x3 = jnp.dot(x2, w2_ref[...], preferred_element_type=jnp.float32) + b2_ref[...]
    x4 = jnp.maximum(x3, 0.0)                       # ReLU
    x5 = jnp.dot(x4, w3_ref[...], preferred_element_type=jnp.float32) + b3_ref[...]

    h = x1 + x5                                     # residual add
    mean = jnp.mean(h, axis=-1, keepdims=True)
    c = h - mean
    var = jnp.mean(c * c, axis=-1, keepdims=True)
    y = c * lax.rsqrt(var + eps) * gamma_ref[...] + beta_ref[...]
    o_ref[...] = y.astype(o_ref.dtype)


def _round_up(n, m):
    return ((n + m - 1) // m) * m


def text_channel_decoder_apply(params, x, *, tile_rows=256):
    """x: (..., in_features) f32.  Returns (..., size1) f32."""
    in_features, size1 = params["w1"].shape
    size2 = params["w2"].shape[1]
    assert x.shape[-1] == in_features

    lead = x.shape[:-1]
    x2d = x.reshape(-1, in_features).astype(jnp.float32)
    n = x2d.shape[0]

    # Row tile: keep VMEM bounded + give the pipeline many steps; for tiny
    # inputs shrink to the (8-aligned) row count so blocks stay legal.
    tm = min(tile_rows, _round_up(n, 8))
    n_pad = _round_up(n, tm)
    if n_pad != n:
        x2d = jnp.pad(x2d, ((0, n_pad - n), (0, 0)))

    kernel = functools.partial(_decoder_kernel, eps=LN_EPS)

    def full_spec(shape):
        return pl.BlockSpec(shape, lambda i: (0,) * len(shape))

    out = pl.pallas_call(
        kernel,
        out_shape=jax.ShapeDtypeStruct((n_pad, size1), jnp.float32),
        grid=(n_pad // tm,),
        in_specs=[
            pl.BlockSpec((tm, in_features), lambda i: (i, 0)),   # x tile
            full_spec((in_features, size1)),                     # w1
            full_spec((1, size1)),                               # b1
            full_spec((size1, size2)),                           # w2
            full_spec((1, size2)),                               # b2
            full_spec((size2, size1)),                           # w3
            full_spec((1, size1)),                               # b3
            full_spec((1, size1)),                               # LN gamma
            full_spec((1, size1)),                               # LN beta
        ],
        out_specs=pl.BlockSpec((tm, size1), lambda i: (i, 0)),
        compiler_params=pltpu.CompilerParams(
            dimension_semantics=("parallel",)),                  # rows are independent
    )(x2d, params["w1"], params["b1"], params["w2"], params["b2"],
      params["w3"], params["b3"], params["gamma"], params["beta"])

    return out[:n].reshape(lead + (size1,))


# ---------------- parameters (PyTorch-default init, weights stored (in, out)) --------


def init_text_channel_decoder(key, in_features, size1, size2):
    def linear(k, fan_in, fan_out):
        kw, kb = jax.random.split(k)
        bound = 1.0 / math.sqrt(fan_in)
        w = jax.random.uniform(kw, (fan_in, fan_out), jnp.float32, -bound, bound)
        b = jax.random.uniform(kb, (1, fan_out), jnp.float32, -bound, bound)
        return w, b

    k1, k2, k3 = jax.random.split(key, 3)
    w1, b1 = linear(k1, in_features, size1)
    w2, b2 = linear(k2, size1, size2)
    w3, b3 = linear(k3, size2, size1)
    return dict(w1=w1, b1=b1, w2=w2, b2=b2, w3=w3, b3=b3,
                gamma=jnp.ones((1, size1), jnp.float32),   # nn.LayerNorm weight
                beta=jnp.zeros((1, size1), jnp.float32))   # nn.LayerNorm bias


# ---------------- pure-JAX reference (for correctness check) -------------------------


def text_channel_decoder_ref(params, x):
    x1 = x @ params["w1"] + params["b1"][0]
    x2 = jax.nn.relu(x1)
    x3 = x2 @ params["w2"] + params["b2"][0]
    x4 = jax.nn.relu(x3)
    x5 = x4 @ params["w3"] + params["b3"][0]
    h = x1 + x5
    mean = jnp.mean(h, axis=-1, keepdims=True)
    var = jnp.mean((h - mean) ** 2, axis=-1, keepdims=True)
    return (h - mean) / jnp.sqrt(var + LN_EPS) * params["gamma"][0] + params["beta"][0]


if __name__ == "__main__":
    key = jax.random.PRNGKey(0)
    kp, kx = jax.random.split(key)

    # Small shapes consistent with the module: (batch, seq, in_features),
    # size1 lane-dense (128), size2 = 64.
    B, S = 2, 8
    in_features, size1, size2 = 32, 128, 64

    params = init_text_channel_decoder(kp, in_features, size1, size2)
    x = jax.random.normal(kx, (B, S, in_features), jnp.float32)

    out = jax.jit(text_channel_decoder_apply)(params, x)
    out = jax.block_until_ready(out)

    ref = text_channel_decoder_ref(params, x)
    assert out.shape == (B, S, size1), out.shape
    assert jnp.all(jnp.isfinite(out))
    max_err = float(jnp.max(jnp.abs(out - ref)))
    assert jnp.allclose(out, ref, atol=1e-4, rtol=1e-4), max_err
    print("KERNEL_OK")
</pallas_src>

<mosaic_0001>
module attributes {stable_mosaic.version = 11 : i64} {
  func.func @_decoder_kernel(%arg0: i32, %arg1: memref<16x32xf32, #tpu.memory_space<vmem>>, %arg2: memref<32x128xf32, #tpu.memory_space<vmem>>, %arg3: memref<1x128xf32, #tpu.memory_space<vmem>>, %arg4: memref<128x64xf32, #tpu.memory_space<vmem>>, %arg5: memref<1x64xf32, #tpu.memory_space<vmem>>, %arg6: memref<64x128xf32, #tpu.memory_space<vmem>>, %arg7: memref<1x128xf32, #tpu.memory_space<vmem>>, %arg8: memref<1x128xf32, #tpu.memory_space<vmem>>, %arg9: memref<1x128xf32, #tpu.memory_space<vmem>>, %arg10: memref<16x128xf32, #tpu.memory_space<vmem>>) attributes {dimension_semantics = [#tpu.dimension_semantics<parallel>], iteration_bounds = array<i64: 1>, scalar_prefetch = 0 : i64, scratch_operands = 0 : i64, tpu.core_type = #tpu.core_type<tc>, window_params = [{transform_indices = @transform_0, window_bounds = array<i64: 16, 32>}, {pipeline_mode = #tpu.pipeline_mode<synchronous>, transform_indices = @transform_1, window_bounds = array<i64: 32, 128>}, {pipeline_mode = #tpu.pipeline_mode<synchronous>, transform_indices = @transform_2, window_bounds = array<i64: 1, 128>}, {pipeline_mode = #tpu.pipeline_mode<synchronous>, transform_indices = @transform_3, window_bounds = array<i64: 128, 64>}, {pipeline_mode = #tpu.pipeline_mode<synchronous>, transform_indices = @transform_4, window_bounds = array<i64: 1, 64>}, {pipeline_mode = #tpu.pipeline_mode<synchronous>, transform_indices = @transform_5, window_bounds = array<i64: 64, 128>}, {pipeline_mode = #tpu.pipeline_mode<synchronous>, transform_indices = @transform_6, window_bounds = array<i64: 1, 128>}, {pipeline_mode = #tpu.pipeline_mode<synchronous>, transform_indices = @transform_7, window_bounds = array<i64: 1, 128>}, {pipeline_mode = #tpu.pipeline_mode<synchronous>, transform_indices = @transform_8, window_bounds = array<i64: 1, 128>}, {transform_indices = @transform_9, window_bounds = array<i64: 16, 128>}]} {
    %c0 = arith.constant 0 : index
    %c0_0 = arith.constant 0 : index
    %0 = vector.load %arg1[%c0, %c0_0] : memref<16x32xf32, #tpu.memory_space<vmem>>, vector<16x32xf32>
    %c0_1 = arith.constant 0 : index
    %c0_2 = arith.constant 0 : index
    %1 = vector.load %arg2[%c0_1, %c0_2] : memref<32x128xf32, #tpu.memory_space<vmem>>, vector<32x128xf32>
    %cst = arith.constant dense<0.000000e+00> : vector<16x128xf32>
    %2 = tpu.matmul %0, %1, %cst {dimension_numbers = #tpu.dot_dimension_numbers<[1], [0], [0], [1], [0, 0, 1, 1], [], []>} : vector<16x32xf32>, vector<32x128xf32>, vector<16x128xf32> -> vector<16x128xf32>
    %c0_3 = arith.constant 0 : index
    %c0_4 = arith.constant 0 : index
    %3 = vector.load %arg3[%c0_3, %c0_4] : memref<1x128xf32, #tpu.memory_space<vmem>>, vector<1x128xf32>
    %4 = vector.broadcast %3 : vector<1x128xf32> to vector<16x128xf32>
    %5 = arith.addf %2, %4 : vector<16x128xf32>
    %cst_5 = arith.constant 0.000000e+00 : f32
    %6 = vector.broadcast %cst_5 : f32 to vector<16x128xf32>
    %7 = arith.maximumf %5, %6 : vector<16x128xf32>
    %c0_6 = arith.constant 0 : index
    %c0_7 = arith.constant 0 : index
    %8 = vector.load %arg4[%c0_6, %c0_7] : memref<128x64xf32, #tpu.memory_space<vmem>>, vector<128x64xf32>
    %cst_8 = arith.constant dense<0.000000e+00> : vector<16x64xf32>
    %9 = tpu.matmul %7, %8, %cst_8 {dimension_numbers = #tpu.dot_dimension_numbers<[1], [0], [0], [1], [0, 0, 1, 1], [], []>} : vector<16x128xf32>, vector<128x64xf32>, vector<16x64xf32> -> vector<16x64xf32>
    %c0_9 = arith.constant 0 : index
    %c0_10 = arith.constant 0 : index
    %10 = vector.load %arg5[%c0_9, %c0_10] : memref<1x64xf32, #tpu.memory_space<vmem>>, vector<1x64xf32>
    %11 = vector.broadcast %10 : vector<1x64xf32> to vector<16x64xf32>
    %12 = arith.addf %9, %11 : vector<16x64xf32>
    %cst_11 = arith.constant 0.000000e+00 : f32
    %13 = vector.broadcast %cst_11 : f32 to vector<16x64xf32>
    %14 = arith.maximumf %12, %13 : vector<16x64xf32>
    %c0_12 = arith.constant 0 : index
    %c0_13 = arith.constant 0 : index
    %15 = vector.load %arg6[%c0_12, %c0_13] : memref<64x128xf32, #tpu.memory_space<vmem>>, vector<64x128xf32>
    %cst_14 = arith.constant dense<0.000000e+00> : vector<16x128xf32>
    %16 = tpu.matmul %14, %15, %cst_14 {dimension_numbers = #tpu.dot_dimension_numbers<[1], [0], [0], [1], [0, 0, 1, 1], [], []>} : vector<16x64xf32>, vector<64x128xf32>, vector<16x128xf32> -> vector<16x128xf32>
    %c0_15 = arith.constant 0 : index
    %c0_16 = arith.constant 0 : index
    %17 = vector.load %arg7[%c0_15, %c0_16] : memref<1x128xf32, #tpu.memory_space<vmem>>, vector<1x128xf32>
    %18 = vector.broadcast %17 : vector<1x128xf32> to vector<16x128xf32>
    %19 = arith.addf %16, %18 : vector<16x128xf32>
    %20 = arith.addf %5, %19 : vector<16x128xf32>
    %cst_17 = arith.constant dense<0.000000e+00> : vector<16xf32>
    %21 = vector.multi_reduction <add>, %20, %cst_17 [1] : vector<16x128xf32> to vector<16xf32>
    %22 = vector.shape_cast %21 : vector<16xf32> to vector<16x1xf32>
    %cst_18 = arith.constant 1.280000e+02 : f32
    %23 = vector.broadcast %cst_18 : f32 to vector<16x1xf32>
    %24 = arith.divf %22, %23 : vector<16x1xf32>
    %25 = vector.broadcast %24 : vector<16x1xf32> to vector<16x128xf32>
    %26 = arith.subf %20, %25 : vector<16x128xf32>
    %27 = arith.mulf %26, %26 : vector<16x128xf32>
    %cst_19 = arith.constant dense<0.000000e+00> : vector<16xf32>
    %28 = vector.multi_reduction <add>, %27, %cst_19 [1] : vector<16x128xf32> to vector<16xf32>
    %29 = vector.shape_cast %28 : vector<16xf32> to vector<16x1xf32>
    %cst_20 = arith.constant 1.280000e+02 : f32
    %30 = vector.broadcast %cst_20 : f32 to vector<16x1xf32>
    %31 = arith.divf %29, %30 : vector<16x1xf32>
    %cst_21 = arith.constant 9.99999997E-7 : f32
    %32 = vector.broadcast %cst_21 : f32 to vector<16x1xf32>
    %33 = arith.addf %31, %32 : vector<16x1xf32>
    %34 = math.rsqrt %33 : vector<16x1xf32>
    %35 = vector.broadcast %34 : vector<16x1xf32> to vector<16x128xf32>
    %36 = arith.mulf %26, %35 : vector<16x128xf32>
    %c0_22 = arith.constant 0 : index
    %c0_23 = arith.constant 0 : index
    %37 = vector.load %arg8[%c0_22, %c0_23] : memref<1x128xf32, #tpu.memory_space<vmem>>, vector<1x128xf32>
    %38 = vector.broadcast %37 : vector<1x128xf32> to vector<16x128xf32>
    %39 = arith.mulf %36, %38 : vector<16x128xf32>
    %c0_24 = arith.constant 0 : index
    %c0_25 = arith.constant 0 : index
    %40 = vector.load %arg9[%c0_24, %c0_25] : memref<1x128xf32, #tpu.memory_space<vmem>>, vector<1x128xf32>
    %41 = vector.broadcast %40 : vector<1x128xf32> to vector<16x128xf32>
    %42 = arith.addf %39, %41 : vector<16x128xf32>
    %c0_26 = arith.constant 0 : index
    %c0_27 = arith.constant 0 : index
    %43 = vector.load %arg10[%c0_26, %c0_27] : memref<16x128xf32, #tpu.memory_space<vmem>>, vector<16x128xf32>
    tpu.vector_store %arg10[%c0_26, %c0_27], %42 {strides = array<i32>} : memref<16x128xf32, #tpu.memory_space<vmem>>, vector<16x128xf32>,
    return
  }
  func.func @transform_0(%arg0: i32) -> (i32, i32) {
    %c0_i32 = arith.constant 0 : i32
    %c0_i32_0 = arith.constant 0 : i32
    return %arg0, %c0_i32 : i32, i32
  }
  func.func @transform_1(%arg0: i32) -> (i32, i32) {
    %c0_i32 = arith.constant 0 : i32
    %c0_i32_0 = arith.constant 0 : i32
    %c0_i32_1 = arith.constant 0 : i32
    return %c0_i32, %c0_i32_0 : i32, i32
  }
  func.func @transform_2(%arg0: i32) -> (i32, i32) {
    %c0_i32 = arith.constant 0 : i32
    %c0_i32_0 = arith.constant 0 : i32
    %c0_i32_1 = arith.constant 0 : i32
    return %c0_i32, %c0_i32_0 : i32, i32
  }
  func.func @transform_3(%arg0: i32) -> (i32, i32) {
    %c0_i32 = arith.constant 0 : i32
    %c0_i32_0 = arith.constant 0 : i32
    %c0_i32_1 = arith.constant 0 : i32
    return %c0_i32, %c0_i32_0 : i32, i32
  }
  func.func @transform_4(%arg0: i32) -> (i32, i32) {
    %c0_i32 = arith.constant 0 : i32
    %c0_i32_0 = arith.constant 0 : i32
    %c0_i32_1 = arith.constant 0 : i32
    return %c0_i32, %c0_i32_0 : i32, i32
  }
  func.func @transform_5(%arg0: i32) -> (i32, i32) {
    %c0_i32 = arith.constant 0 : i32
    %c0_i32_0 = arith.constant 0 : i32
    %c0_i32_1 = arith.constant 0 : i32
    return %c0_i32, %c0_i32_0 : i32, i32
  }
  func.func @transform_6(%arg0: i32) -> (i32, i32) {
    %c0_i32 = arith.constant 0 : i32
    %c0_i32_0 = arith.constant 0 : i32
    %c0_i32_1 = arith.constant 0 : i32
    return %c0_i32, %c0_i32_0 : i32, i32
  }
  func.func @transform_7(%arg0: i32) -> (i32, i32) {
    %c0_i32 = arith.constant 0 : i32
    %c0_i32_0 = arith.constant 0 : i32
    %c0_i32_1 = arith.constant 0 : i32
    return %c0_i32, %c0_i32_0 : i32, i32
  }
  func.func @transform_8(%arg0: i32) -> (i32, i32) {
    %c0_i32 = arith.constant 0 : i32
    %c0_i32_0 = arith.constant 0 : i32
    %c0_i32_1 = arith.constant 0 : i32
    return %c0_i32, %c0_i32_0 : i32, i32
  }
  func.func @transform_9(%arg0: i32) -> (i32, i32) {
    %c0_i32 = arith.constant 0 : i32
    %c0_i32_0 = arith.constant 0 : i32
    return %arg0, %c0_i32 : i32, i32
  }
}

</mosaic_0001>

<llo_original>
// kernel: text_channel_decoder_apply.1
$region0: #{text_channel_decoder_apply.1}
  #allocation0 [shape = 'u32[]', space=smem, size = 0x4, offset = 0x4, fixed_abs, tag = 'smem constant byte address 0x4 - core index']
  #allocation1 [shape = 'u32[144,128]{1,0:T(1,128)}', space=vmem, size = 0x12000, scoped, tag = 'internal scratch']
  %s0 = inlined_call_operand.vmem [shape: f32[16,32], index: 0, kind: input, shape index: {}]
  %s1 = inlined_call_operand.vmem [shape: f32[32,128], index: 1, kind: input, shape index: {}]
  %s2 = inlined_call_operand.vmem [shape: f32[1,128], index: 2, kind: input, shape index: {}]
  %s3 = inlined_call_operand.vmem [shape: f32[128,64], index: 3, kind: input, shape index: {}]
  %s4 = inlined_call_operand.vmem [shape: f32[1,64], index: 4, kind: input, shape index: {}]
  %s5 = inlined_call_operand.vmem [shape: f32[64,128], index: 5, kind: input, shape index: {}]
  %s6 = inlined_call_operand.vmem [shape: f32[1,128], index: 6, kind: input, shape index: {}]
  %s7 = inlined_call_operand.vmem [shape: f32[1,128], index: 7, kind: input, shape index: {}]
  %s8 = inlined_call_operand.vmem [shape: f32[1,128], index: 8, kind: input, shape index: {}]
  %s9 = inlined_call_operand.hbm [shape: f32[16,128], index: 9, kind: output, shape index: {}]
  %s10 = sld [smem:[#allocation0]]
  $region46: #{text_channel_decoder_apply.1} parent=0
    _
  %s12 = ssub.s32 1, %s10
  %s13 = scalar_select 0, %s12, %s10
  $region1: #{text_channel_decoder_apply.1} parent=0
    #allocation2 [shape = 'u8[8192]{0}', space=vmem, size = 0x2000, scoped, tag = 'output window, operand 0, single buffered']
    #allocation3 [shape = 's32[1]{0}', space=sflag, size = 0x4, scoped, tag = 'scoped memory for text_channel_decoder_apply.1']
    %14 = vsyncpa [#allocation3], 0
    // Predicated region
    $region2: #{text_channel_decoder_apply.1} parent=1 // pred_check
      _
    $region3: #{text_channel_decoder_apply.1} parent=1 // pred_check_branch
      %16 = sbr.rel (0) target = $region5
    $region4: #{text_channel_decoder_apply.1} parent=1 // pred_region
      _
    $region5: #{text_channel_decoder_apply.1} parent=1 // pred_fallthru
      _
    // Predicated region
    $region6: #{text_channel_decoder_apply.1} parent=1 // pred_check
      _
    $region7: #{text_channel_decoder_apply.1} parent=1 // pred_check_branch
      %18 = sbr.rel (0) target = $region9
    $region8: #{text_channel_decoder_apply.1} parent=1 // pred_region
      _
    $region9: #{text_channel_decoder_apply.1} parent=1 // pred_fallthru
      _
    // Predicated region
    $region10: #{text_channel_decoder_apply.1} parent=1 // pred_check
      _
    $region11: #{text_channel_decoder_apply.1} parent=1 // pred_check_branch
      %20 = sbr.rel (0) target = $region13
    $region12: #{text_channel_decoder_apply.1} parent=1 // pred_region
      _
    $region13: #{text_channel_decoder_apply.1} parent=1 // pred_fallthru
      _
    // Predicated region
    $region14: #{text_channel_decoder_apply.1} parent=1 // pred_check
      _
    $region15: #{text_channel_decoder_apply.1} parent=1 // pred_check_branch
      %22 = sbr.rel (0) target = $region17
    $region16: #{text_channel_decoder_apply.1} parent=1 // pred_region
      _
    $region17: #{text_channel_decoder_apply.1} parent=1 // pred_fallthru
      _
    // Predicated region
    $region18: #{text_channel_decoder_apply.1} parent=1 // pred_check
      _
    $region19: #{text_channel_decoder_apply.1} parent=1 // pred_check_branch
      %24 = sbr.rel (0) target = $region21
    $region20: #{text_channel_decoder_apply.1} parent=1 // pred_region
      _
    $region21: #{text_channel_decoder_apply.1} parent=1 // pred_fallthru
      _
    // Predicated region
    $region22: #{text_channel_decoder_apply.1} parent=1 // pred_check
      _
    $region23: #{text_channel_decoder_apply.1} parent=1 // pred_check_branch
      %26 = sbr.rel (0) target = $region25
    $region24: #{text_channel_decoder_apply.1} parent=1 // pred_region
      _
    $region25: #{text_channel_decoder_apply.1} parent=1 // pred_fallthru
      _
    // Predicated region
    $region26: #{text_channel_decoder_apply.1} parent=1 // pred_check
      _
    $region27: #{text_channel_decoder_apply.1} parent=1 // pred_check_branch
      %28 = sbr.rel (0) target = $region29
    $region28: #{text_channel_decoder_apply.1} parent=1 // pred_region
      _
    $region29: #{text_channel_decoder_apply.1} parent=1 // pred_fallthru
      _
    // Predicated region
    $region30: #{text_channel_decoder_apply.1} parent=1 // pred_check
      _
    $region31: #{text_channel_decoder_apply.1} parent=1 // pred_check_branch
      %30 = sbr.rel (0) target = $region33
    $region32: #{text_channel_decoder_apply.1} parent=1 // pred_region
      _
    $region33: #{text_channel_decoder_apply.1} parent=1 // pred_fallthru
      _
    // Predicated region
    $region34: #{text_channel_decoder_apply.1} parent=1 // pred_check
      _
    $region35: #{text_channel_decoder_apply.1} parent=1 // pred_check_branch
      %32 = sbr.rel (0) target = $region37
    $region36: #{text_channel_decoder_apply.1} parent=1 // pred_region
      _
    $region37: #{text_channel_decoder_apply.1} parent=1 // pred_fallthru
      _
    %v33 = vld [vmem:[%s0] sm:$0xff]
    %v34 = vld [vmem:[%s0 + $0x8] sm:$0xff]
    %v35 = vld [vmem:[%s1] sm:$0xff]
    %v36 = vld [vmem:[%s1 + $0x8] sm:$0xff]
    %v37 = vld [vmem:[%s1 + $0x10] sm:$0xff]
    %v38 = vld [vmem:[%s1 + $0x18] sm:$0xff]
    %v39 = vld [vmem:[%s2] sm:$0x1]
    %v41 = vlaneseq
    %v42 = vshrl.u32 %v41, 7
    %v43 = vsub.s32 0, %v42
    %v44 = vrot.slane %v39, %v43
    %vm46 = vcmask 261120
    %v48 = vsel %vm46, %v33, 0
    %v51 = vsel %vm46, %v34, 0
    %53 = vmatprep.subr.mxu0 0.0
    %54 = vmatpush1.msra.mxu0 0.0
    %55 = vmatprep.subr.mxu0 0.0
    %56 = vmatpush1.msra.mxu0 0.0
    %57 = vmatprep.subr.mxu0 0.0
    %58 = vmatpush1.msra.mxu0 0.0
    %59 = vmatprep.subr.mxu0 0.0
    %60 = vmatpush1.msra.mxu0 0.0
    %61 = vmatprep.subr.mxu0 0.0
    %62 = vmatpush1.msra.mxu0 0.0
    %63 = vmatprep.subr.mxu0 0.0
    %64 = vmatpush1.msra.mxu0 0.0
    %65 = vmatprep.subr.mxu0 0.0
    %66 = vmatpush1.msra.mxu0 0.0
    %67 = vmatprep.subr.mxu0 0.0
    %68 = vmatpush1.msra.mxu0 0.0
    %69 = vmatprep.subr.mxu0 0.0
    %70 = vmatpush1.msra.mxu0 0.0
    %71 = vmatprep.subr.mxu0 0.0
    %72 = vmatpush1.msra.mxu0 0.0
    %73 = vmatprep.subr.mxu0 0.0
    %74 = vmatpush1.msra.mxu0 0.0
    %75 = vmatprep.subr.mxu0 0.0
    %76 = vmatpush1.msra.mxu0 0.0
    %77 = vmatprep.subr.mxu0 0.0
    %78 = vmatpush1.msra.mxu0 %v38
    %79 = vmatprep.subr.mxu0 0.0
    %80 = vmatpush1.msra.mxu0 %v37
    %81 = vmatprep.subr.mxu0 0.0
    %82 = vmatpush1.msra.mxu0 %v36
    %83 = vmatprep.subr.mxu0 0.0
    %84 = vmatpush1.msra.mxu0 %v35
    %85 = vmatprep.subr.mxu0 0.0
    %86 = vmatpush2.msra.mxu0 0.0
    %87 = vmatprep.subr.mxu0 0.0
    %88 = vmatpush2.msra.mxu0 0.0
    %89 = vmatprep.subr.mxu0 0.0
    %90 = vmatpush2.msra.mxu0 0.0
    %91 = vmatprep.subr.mxu0 0.0
    %92 = vmatpush2.msra.mxu0 0.0
    %93 = vmatprep.subr.mxu0 0.0
    %94 = vmatpush2.msra.mxu0 0.0
    %95 = vmatprep.subr.mxu0 0.0
    %96 = vmatpush2.msra.mxu0 0.0
    %97 = vmatprep.subr.mxu0 0.0
    %98 = vmatpush2.msra.mxu0 0.0
    %99 = vmatprep.subr.mxu0 0.0
    %100 = vmatpush2.msra.mxu0 0.0
    %101 = vmatprep.subr.mxu0 0.0
    %102 = vmatpush2.msra.mxu0 0.0
    %103 = vmatprep.subr.mxu0 0.0
    %104 = vmatpush2.msra.mxu0 0.0
    %105 = vmatprep.subr.mxu0 0.0
    %106 = vmatpush2.msra.mxu0 0.0
    %107 = vmatprep.subr.mxu0 0.0
    %108 = vmatpush2.msra.mxu0 0.0
    %109 = vmatprep.subr.mxu0 0.0
    %110 = vmatpush2.msra.mxu0 0.0
    %111 = vmatprep.subr.mxu0 0.0
    %112 = vmatpush2.msra.mxu0 0.0
    %113 = vmatprep.subr.mxu0 0.0
    %114 = vmatpush2.msra.mxu0 0.0
    %115 = vmatprep.subr.mxu0 0.0
    %116 = vmatpush2.msra.mxu0 0.0
    %117 = vmatprep.mubr.f32.mxu0 0.0
    %118 = vmatmul.mubr.f32.gmra.mxu0 %v48
    %v119 = vpop.f32.mrf.mxu0
    %v120 = vadd.f32 %v44, %v119
    %v121 = vpop.f32.mrf.mxu0
    %122 = vmatprep.mubr.f32.mxu0 0.0
    %123 = vmatmul.mubr.f32.gmra.mxu0 %v51
    %v124 = vpop.f32.mrf.mxu0
    %v125 = vadd.f32 %v44, %v124
    %v126 = vpop.f32.mrf.mxu0
    %127 = vdwg.mxu0
    %v128 = vmax.f32 %v120, 0.0
    %v129 = vmax.f32 %v125, 0.0
    %v130 = vld [vmem:[%s3] sm:$0xff]
    %v131 = vld [vmem:[%s3 + $0x8] sm:$0xff]
    %v132 = vld [vmem:[%s3 + $0x10] sm:$0xff]
    %v133 = vld [vmem:[%s3 + $0x18] sm:$0xff]
    %v134 = vld [vmem:[%s3 + $0x20] sm:$0xff]
    %v135 = vld [vmem:[%s3 + $0x28] sm:$0xff]
    %v136 = vld [vmem:[%s3 + $0x30] sm:$0xff]
    %v137 = vld [vmem:[%s3 + $0x38] sm:$0xff]
    %v138 = vld [vmem:[%s3 + $0x40] sm:$0xff]
    %v139 = vld [vmem:[%s3 + $0x48] sm:$0xff]
    %v140 = vld [vmem:[%s3 + $0x50] sm:$0xff]
    %v141 = vld [vmem:[%s3 + $0x58] sm:$0xff]
    %v142 = vld [vmem:[%s3 + $0x60] sm:$0xff]
    %v143 = vld [vmem:[%s3 + $0x68] sm:$0xff]
    %v144 = vld [vmem:[%s3 + $0x70] sm:$0xff]
    %v145 = vld [vmem:[%s3 + $0x78] sm:$0xff]
    %v146 = vld [vmem:[%s4] sm:$0x1]
    %v148 = vlaneseq
    %v149 = vshrl.u32 %v148, 7
    %v150 = vsub.s32 0, %v149
    %v151 = vrot.slane %v146, %v150
    %153 = vmatprep.subr.mxu0 0.0
    %154 = vmatpush1.msra.mxu0 %v145
    %155 = vmatprep.subr.mxu0 0.0
    %156 = vmatpush1.msra.mxu0 %v144
    %157 = vmatprep.subr.mxu0 0.0
    %158 = vmatpush1.msra.mxu0 %v143
    %159 = vmatprep.subr.mxu0 0.0
    %160 = vmatpush1.msra.mxu0 %v142
    %161 = vmatprep.subr.mxu0 0.0
    %162 = vmatpush1.msra.mxu0 %v141
    %163 = vmatprep.subr.mxu0 0.0
    %164 = vmatpush1.msra.mxu0 %v140
    %165 = vmatprep.subr.mxu0 0.0
    %166 = vmatpush1.msra.mxu0 %v139
    %167 = vmatprep.subr.mxu0 0.0
    %168 = vmatpush1.msra.mxu0 %v138
    %169 = vmatprep.subr.mxu0 0.0
    %170 = vmatpush1.msra.mxu0 %v137
    %171 = vmatprep.subr.mxu0 0.0
    %172 = vmatpush1.msra.mxu0 %v136
    %173 = vmatprep.subr.mxu0 0.0
    %174 = vmatpush1.msra.mxu0 %v135
    %175 = vmatprep.subr.mxu0 0.0
    %176 = vmatpush1.msra.mxu0 %v134
    %177 = vmatprep.subr.mxu0 0.0
    %178 = vmatpush1.msra.mxu0 %v133
    %179 = vmatprep.subr.mxu0 0.0
    %180 = vmatpush1.msra.mxu0 %v132
    %181 = vmatprep.subr.mxu0 0.0
    %182 = vmatpush1.msra.mxu0 %v131
    %183 = vmatprep.subr.mxu0 0.0
    %184 = vmatpush1.msra.mxu0 %v130
    %185 = vmatprep.subr.mxu0 0.0
    %186 = vmatpush2.msra.mxu0 0.0
    %187 = vmatprep.subr.mxu0 0.0
    %188 = vmatpush2.msra.mxu0 0.0
    %189 = vmatprep.subr.mxu0 0.0
    %190 = vmatpush2.msra.mxu0 0.0
    %191 = vmatprep.subr.mxu0 0.0
    %192 = vmatpush2.msra.mxu0 0.0
    %193 = vmatprep.subr.mxu0 0.0
    %194 = vmatpush2.msra.mxu0 0.0
    %195 = vmatprep.subr.mxu0 0.0
    %196 = vmatpush2.msra.mxu0 0.0
    %197 = vmatprep.subr.mxu0 0.0
    %198 = vmatpush2.msra.mxu0 0.0
    %199 = vmatprep.subr.mxu0 0.0
    %200 = vmatpush2.msra.mxu0 0.0
    %201 = vmatprep.subr.mxu0 0.0
    %202 = vmatpush2.msra.mxu0 0.0
    %203 = vmatprep.subr.mxu0 0.0
    %204 = vmatpush2.msra.mxu0 0.0
    %205 = vmatprep.subr.mxu0 0.0
    %206 = vmatpush2.msra.mxu0 0.0
    %207 = vmatprep.subr.mxu0 0.0
    %208 = vmatpush2.msra.mxu0 0.0
    %209 = vmatprep.subr.mxu0 0.0
    %210 = vmatpush2.msra.mxu0 0.0
    %211 = vmatprep.subr.mxu0 0.0
    %212 = vmatpush2.msra.mxu0 0.0
    %213 = vmatprep.subr.mxu0 0.0
    %214 = vmatpush2.msra.mxu0 0.0
    %215 = vmatprep.subr.mxu0 0.0
    %216 = vmatpush2.msra.mxu0 0.0
    %217 = vmatprep.mubr.f32.mxu0 0.0
    %218 = vmatmul.mubr.f32.gmra.mxu0 %v128
    %v219 = vpop.f32.mrf.mxu0
    %v220 = vadd.f32 %v151, %v219
    %v221 = vpop.f32.mrf.mxu0
    %222 = vmatprep.mubr.f32.mxu0 0.0
    %223 = vmatmul.mubr.f32.gmra.mxu0 %v129
    %v224 = vpop.f32.mrf.mxu0
    %v225 = vadd.f32 %v151, %v224
    %v226 = vpop.f32.mrf.mxu0
    %227 = vdwg.mxu0
    %v228 = vmax.f32 %v220, 0.0
    %v229 = vmax.f32 %v225, 0.0
    %v230 = vld [vmem:[%s5] sm:$0xff]
    %v231 = vld [vmem:[%s5 + $0x8] sm:$0xff]
    %v232 = vld [vmem:[%s5 + $0x10] sm:$0xff]
    %v233 = vld [vmem:[%s5 + $0x18] sm:$0xff]
    %v234 = vld [vmem:[%s5 + $0x20] sm:$0xff]
    %v235 = vld [vmem:[%s5 + $0x28] sm:$0xff]
    %v236 = vld [vmem:[%s5 + $0x30] sm:$0xff]
    %v237 = vld [vmem:[%s5 + $0x38] sm:$0xff]
    %v238 = vld [vmem:[%s6] sm:$0x1]
    %v240 = vlaneseq
    %v241 = vshrl.u32 %v240, 7
    %v242 = vsub.s32 0, %v241
    %v243 = vrot.slane %v238, %v242
    %vm245 = vcmask 523264
    %v247 = vsel %vm245, %v228, 0
    %v250 = vsel %vm245, %v229, 0
    %252 = vmatprep.subr.mxu0 0.0
    %253 = vmatpush1.msra.mxu0 0.0
    %254 = vmatprep.subr.mxu0 0.0
    %255 = vmatpush1.msra.mxu0 0.0
    %256 = vmatprep.subr.mxu0 0.0
    %257 = vmatpush1.msra.mxu0 0.0
    %258 = vmatprep.subr.mxu0 0.0
    %259 = vmatpush1.msra.mxu0 0.0
    %260 = vmatprep.subr.mxu0 0.0
    %261 = vmatpush1.msra.mxu0 0.0
    %262 = vmatprep.subr.mxu0 0.0
    %263 = vmatpush1.msra.mxu0 0.0
    %264 = vmatprep.subr.mxu0 0.0
    %265 = vmatpush1.msra.mxu0 0.0
    %266 = vmatprep.subr.mxu0 0.0
    %267 = vmatpush1.msra.mxu0 0.0
    %268 = vmatprep.subr.mxu0 0.0
    %269 = vmatpush1.msra.mxu0 %v237
    %270 = vmatprep.subr.mxu0 0.0
    %271 = vmatpush1.msra.mxu0 %v236
    %272 = vmatprep.subr.mxu0 0.0
    %273 = vmatpush1.msra.mxu0 %v235
    %274 = vmatprep.subr.mxu0 0.0
    %275 = vmatpush1.msra.mxu0 %v234
    %276 = vmatprep.subr.mxu0 0.0
    %277 = vmatpush1.msra.mxu0 %v233
    %278 = vmatprep.subr.mxu0 0.0
    %279 = vmatpush1.msra.mxu0 %v232
    %280 = vmatprep.subr.mxu0 0.0
    %281 = vmatpush1.msra.mxu0 %v231
    %282 = vmatprep.subr.mxu0 0.0
    %283 = vmatpush1.msra.mxu0 %v230
    %284 = vmatprep.subr.mxu0 0.0
    %285 = vmatpush2.msra.mxu0 0.0
    %286 = vmatprep.subr.mxu0 0.0
    %287 = vmatpush2.msra.mxu0 0.0
    %288 = vmatprep.subr.mxu0 0.0
    %289 = vmatpush2.msra.mxu0 0.0
    %290 = vmatprep.subr.mxu0 0.0
    %291 = vmatpush2.msra.mxu0 0.0
    %292 = vmatprep.subr.mxu0 0.0
    %293 = vmatpush2.msra.mxu0 0.0
    %294 = vmatprep.subr.mxu0 0.0
    %295 = vmatpush2.msra.mxu0 0.0
    %296 = vmatprep.subr.mxu0 0.0
    %297 = vmatpush2.msra.mxu0 0.0
    %298 = vmatprep.subr.mxu0 0.0
    %299 = vmatpush2.msra.mxu0 0.0
    %300 = vmatprep.subr.mxu0 0.0
    %301 = vmatpush2.msra.mxu0 0.0
    %302 = vmatprep.subr.mxu0 0.0
    %303 = vmatpush2.msra.mxu0 0.0
    %304 = vmatprep.subr.mxu0 0.0
    %305 = vmatpush2.msra.mxu0 0.0
    %306 = vmatprep.subr.mxu0 0.0
    %307 = vmatpush2.msra.mxu0 0.0
    %308 = vmatprep.subr.mxu0 0.0
    %309 = vmatpush2.msra.mxu0 0.0
    %310 = vmatprep.subr.mxu0 0.0
    %311 = vmatpush2.msra.mxu0 0.0
    %312 = vmatprep.subr.mxu0 0.0
    %313 = vmatpush2.msra.mxu0 0.0
    %314 = vmatprep.subr.mxu0 0.0
    %315 = vmatpush2.msra.mxu0 0.0
    %316 = vmatprep.mubr.f32.mxu0 0.0
    %317 = vmatmul.mubr.f32.gmra.mxu0 %v247
    %v318 = vpop.f32.mrf.mxu0
    %v319 = vadd.f32 %v243, %v318
    %v320 = vpop.f32.mrf.mxu0
    %321 = vmatprep.mubr.f32.mxu0 0.0
    %322 = vmatmul.mubr.f32.gmra.mxu0 %v250
    %v323 = vpop.f32.mrf.mxu0
    %v324 = vadd.f32 %v243, %v323
    %v325 = vpop.f32.mrf.mxu0
    %326 = vdwg.mxu0
    %v327 = vadd.f32 %v120, %v319
    %v328 = vadd.f32 %v125, %v324
    %329 = vadd.xlane.f32.xlu0 %v327
    %v330 = vpop.xlane.xlu0 %329
    %331 = vadd.xlane.f32.xlu0 %v328
    %v332 = vpop.xlane.xlu0 %331
    %v333 = vrcp.pop 128.0
    %v334 = vmul.f32 %v330, %v333
    %v335 = vmul.f32 %v332, %v333
    %v336 = vsub.f32 %v327, %v334
    %v337 = vsub.f32 %v328, %v335
    %v338 = vmul.f32 %v336, %v336
    %v339 = vmul.f32 %v337, %v337
    %340 = vadd.xlane.f32.xlu0 %v338
    %v341 = vpop.xlane.xlu0 %340
    %342 = vadd.xlane.f32.xlu0 %v339
    %v343 = vpop.xlane.xlu0 %342
    %v344 = vmul.f32 %v341, %v333
    %v345 = vmul.f32 %v343, %v333
    %v346 = vadd.f32 %v344, 1e-06
    %v347 = vadd.f32 %v345, 1e-06
    %v348 = vrsqrt.pop %v346
    %v349 = vrsqrt.pop %v347
    %v350 = vmul.f32 %v336, %v348
    %v351 = vmul.f32 %v337, %v349
    %v352 = vld [vmem:[%s7] sm:$0x1]
    %v354 = vlaneseq
    %v355 = vshrl.u32 %v354, 7
    %v356 = vsub.s32 0, %v355
    %v357 = vrot.slane %v352, %v356
    %v359 = vmul.f32 %v350, %v357
    %v360 = vmul.f32 %v351, %v357
    %v361 = vld [vmem:[%s8] sm:$0x1]
    %v363 = vlaneseq
    %v364 = vshrl.u32 %v363, 7
    %v365 = vsub.s32 0, %v364
    %v366 = vrot.slane %v361, %v365
    %v368 = vadd.f32 %v359, %v366
    %v369 = vadd.f32 %v360, %v366
    %370 = vst [vmem:[#allocation2] sm:$0xff] %v368
    %371 = vst [vmem:[#allocation2 + $0x8] sm:$0xff] %v369
    // Predicated region
    $region38: #{text_channel_decoder_apply.1} parent=1 // pred_check
      _
    $region39: #{text_channel_decoder_apply.1} parent=1 // pred_check_branch
      %373 = sbr.rel (0) target = $region41
    $region40: #{text_channel_decoder_apply.1} parent=1 // pred_region
      %s375 = ssub.s32 256, 256
      %376 = vsyncadd [#allocation3], %s375
      %s377 = sshll.u32 [#allocation2], 4
      %s378 = int_to_ptr.vmem [resolvable:$true] %s377
      %383 = dma.vmem_to_hbm [thread:$0]  %s378, 256, %s9, [#allocation3], 128, 128, 8
    $region41: #{text_channel_decoder_apply.1} parent=1 // pred_fallthru
      _
    // Predicated region
    $region42: #{text_channel_decoder_apply.1} parent=1 // pred_check
      _
    $region43: #{text_channel_decoder_apply.1} parent=1 // pred_check_branch
      %385 = sbr.rel (0) target = $region45
    $region44: #{text_channel_decoder_apply.1} parent=1 // pred_region
      %386 = dma.done [#allocation3], 256
    $region45: #{text_channel_decoder_apply.1} parent=1 // pred_fallthru
      _
    %387 = vsyncpa [#allocation3], 1

</llo_original>
